<compile_context>
chip_gen: v5e
topology: v5e:2x2
jax: 0.10.0
libtpu: 0.0.40
codegen_flags: <defaults>
</compile_context>

<pallas_src>
import functools

import jax
import jax.numpy as jnp
from jax.experimental import pallas as pl
from jax.experimental.pallas import tpu as pltpu

_NEG_SLOPE = 0.01   # F.leaky_relu default
_LANE = 128
_SUBLANE = 8


def _round_up(x, m):
    return (x + m - 1) // m * m


# --------------------------------------------------------------------------
# Fused MLP kernel: one grid step pushes a (tm, K_pad) activation tile through
# every layer; all weights are fully VMEM-resident (single-buffered).
# --------------------------------------------------------------------------
def _fused_mlp_kernel(x_ref, *refs, num_layers, negative_slope):
    w_refs = refs[:num_layers]
    o_ref = refs[num_layers]

    h = x_ref[...]                       # compute dtype (bf16), fed to MXU as-is
    for li, w_ref in enumerate(w_refs):
        a = jnp.dot(h, w_ref[...], preferred_element_type=jnp.float32)
        # leaky_relu(a) == max(a, slope*a) for 0 < slope < 1; keep it in f32.
        a = jnp.maximum(a, negative_slope * a)
        if li + 1 < num_layers:
            h = a.astype(w_refs[li + 1].dtype)   # bf16 for the next MXU pass
        else:
            h = a                                 # last layer: stay f32
    o_ref[...] = h.astype(o_ref.dtype)


def prepare_weights(torch_weights, dtype=jnp.bfloat16):
    """One-time prep: transpose PyTorch (out,in) weights to (in,out), cast to
    the compute dtype (bf16 by default) and pad both feature dims up to
    multiples of 128 so consecutive layers chain with lane-dense tiles.
    Zero padding is exact for bias-free linear + leaky_relu."""
    prepared = []
    for w in torch_weights:
        wt = jnp.asarray(w).T.astype(dtype)               # (in, out)
        kin, kout = wt.shape
        kin_p, kout_p = _round_up(kin, _LANE), _round_up(kout, _LANE)
        if (kin_p, kout_p) != (kin, kout):
            wt = jnp.pad(wt, ((0, kin_p - kin), (0, kout_p - kout)))
        prepared.append(wt)
    return prepared


def mlp_forward_fused(x, prepared_weights, out_features, *, tm=None,
                      negative_slope=_NEG_SLOPE, out_dtype=None):
    """Fused forward: leaky_relu(...leaky_relu(x @ W1) @ W2 ...).

    x: [M, K] (batch-major, feature-last); prepared_weights: list of padded
    (in, out) matrices from prepare_weights(); out_features: true (unpadded)
    output width of the last layer.
    """
    M, K = x.shape
    K_pad = prepared_weights[0].shape[0]
    N_pad = prepared_weights[-1].shape[1]
    num_layers = len(prepared_weights)
    compute_dtype = prepared_weights[0].dtype
    out_dtype = out_dtype or x.dtype

    # M tiling: small batches -> one 8-row-aligned block; large batches ->
    # 256-row tiles (multiple of 128 for v5e's 4x128 MXU, fills v6e/v7x 256-row
    # MXU, and yields >=2 grid tiles so v7x's second TensorCore is used).
    if tm is None:
        tm = _round_up(M, _SUBLANE) if M <= 256 else 256
    M_pad = _round_up(M, tm)

    x_in = x.astype(compute_dtype)
    if (M_pad, K_pad) != (M, K):
        # Explicit zero-pad (NOT ragged-edge blocks): zero rows/cols are exactly
        # neutral for bias-free linear + leaky_relu.
        x_in = jnp.pad(x_in, ((0, M_pad - M), (0, K_pad - K)))

    kernel = functools.partial(
        _fused_mlp_kernel, num_layers=num_layers, negative_slope=negative_slope
    )

    # x tile streams over the grid (default double-buffered); weights are
    # whole-array, single-buffered, VMEM-resident refs.
    in_specs = [pl.BlockSpec((tm, K_pad), lambda i: (i, 0))]
    for _ in prepared_weights:
        in_specs.append(pl.BlockSpec(memory_space=pltpu.MemorySpace.VMEM))
    out_spec = pl.BlockSpec((tm, N_pad), lambda i: (i, 0))

    # ---- explicit VMEM budget (resident weights + pipelined act tiles) ----
    bpe = jnp.dtype(compute_dtype).itemsize
    out_bpe = jnp.dtype(out_dtype).itemsize
    w_bytes = sum(int(w.size) * w.dtype.itemsize for w in prepared_weights)
    act_bytes = 2 * tm * K_pad * bpe + 2 * tm * N_pad * out_bpe
    widest = max([K_pad] + [w.shape[1] for w in prepared_weights])
    inter_bytes = 2 * tm * widest * (4 + bpe)        # f32 act + bf16 copy, x2
    vmem_needed = w_bytes + act_bytes + inter_bytes
    vmem_limit = int(min(max(vmem_needed * 1.3 + (1 << 20), 4 << 20), 127 << 20))
    # TODO(synk): stream (K/N-tile) the largest layers instead of keeping them
    # resident when w_bytes > ~40 MiB (v7x: 64 MiB VMEM per TensorCore).

    # ---- advisory cost estimate ----
    flops = 0
    k_in = K_pad
    for w in prepared_weights:
        flops += 2 * M_pad * k_in * w.shape[1]
        k_in = w.shape[1]
    bytes_accessed = (M_pad * K_pad * bpe + w_bytes + M_pad * N_pad * out_bpe)

    out_padded = pl.pallas_call(
        kernel,
        out_shape=jax.ShapeDtypeStruct((M_pad, N_pad), out_dtype),
        grid_spec=pltpu.PrefetchScalarGridSpec(
            num_scalar_prefetch=0,
            grid=(M_pad // tm,),
            in_specs=in_specs,
            out_specs=out_spec,
        ),
        compiler_params=pltpu.CompilerParams(
            dimension_semantics=("parallel",),
            vmem_limit_bytes=vmem_limit,
        ),
        cost_estimate=pl.CostEstimate(
            flops=flops, transcendentals=0, bytes_accessed=bytes_accessed
        ),
    )(x_in, *prepared_weights)

    if (M_pad, N_pad) == (M, out_features):
        return out_padded
    return out_padded[:M, :out_features]


# --------------------------------------------------------------------------
# Parameter init matching nn.Linear (bias=False) weight shapes (out, in).
# --------------------------------------------------------------------------
def init_mlp_params(key, dims):
    weights = []
    for i in range(1, len(dims)):
        key, sub = jax.random.split(key)
        bound = 1.0 / jnp.sqrt(dims[i - 1])
        w = jax.random.uniform(
            sub, (dims[i], dims[i - 1]), jnp.float32, minval=-bound, maxval=bound
        )
        weights.append(w)
    return weights


def _reference(x, torch_weights, negative_slope=_NEG_SLOPE,
               compute_dtype=jnp.bfloat16):
    """Pure-JAX reference emulating the same bf16-weight / f32-accumulate
    numerics as the kernel."""
    h = x.astype(compute_dtype)
    n = len(torch_weights)
    for li, w in enumerate(torch_weights):
        wt = jnp.asarray(w).T.astype(compute_dtype)
        a = jnp.dot(h, wt, preferred_element_type=jnp.float32)
        a = jnp.maximum(a, negative_slope * a)
        h = a.astype(compute_dtype) if li + 1 < n else a
    return h.astype(x.dtype)


if __name__ == "__main__":
    key = jax.random.PRNGKey(0)

    # --- aligned case: dims multiples of 128, batch = 8 ---------------------
    k_x, k_w, key = jax.random.split(key, 3)
    dims = [128, 256, 128]
    batch = 8
    x = jax.random.normal(k_x, (batch, dims[0]), jnp.float32)
    weights = init_mlp_params(k_w, dims)          # PyTorch (out, in) convention
    prepared = prepare_weights(weights)           # one-time transpose+cast+pad

    out = mlp_forward_fused(x, prepared, out_features=dims[-1])
    out = jax.block_until_ready(out)
    ref = _reference(x, weights)
    assert out.shape == (batch, dims[-1])
    assert jnp.allclose(out, ref, atol=1e-2, rtol=1e-2), float(
        jnp.max(jnp.abs(out - ref)))

    # --- non-aligned case: exercises the zero-padding path ------------------
    k_x2, k_w2, key = jax.random.split(key, 3)
    dims2 = [96, 160, 72]
    batch2 = 5
    x2 = jax.random.normal(k_x2, (batch2, dims2[0]), jnp.float32)
    weights2 = init_mlp_params(k_w2, dims2)
    prepared2 = prepare_weights(weights2)

    out2 = mlp_forward_fused(x2, prepared2, out_features=dims2[-1])
    out2 = jax.block_until_ready(out2)
    ref2 = _reference(x2, weights2)
    assert out2.shape == (batch2, dims2[-1])
    assert jnp.allclose(out2, ref2, atol=1e-2, rtol=1e-2), float(
        jnp.max(jnp.abs(out2 - ref2)))

    print("KERNEL_OK")
</pallas_src>

<mosaic_0001>
module attributes {stable_mosaic.version = 11 : i64} {
  func.func @_fused_mlp_kernel(%arg0: i32, %arg1: memref<8x128xbf16, #tpu.memory_space<vmem>>, %arg2: memref<128x256xbf16, #tpu.memory_space<vmem>>, %arg3: memref<256x128xbf16, #tpu.memory_space<vmem>>, %arg4: memref<8x128xf32, #tpu.memory_space<vmem>>) attributes {dimension_semantics = [#tpu.dimension_semantics<parallel>], iteration_bounds = array<i64: 1>, scalar_prefetch = 0 : i64, scratch_operands = 0 : i64, tpu.core_type = #tpu.core_type<tc>, window_params = [{transform_indices = @transform_0, window_bounds = array<i64: 8, 128>}, {pipeline_mode = #tpu.pipeline_mode<synchronous>, transform_indices = @transform_1, window_bounds = array<i64: 128, 256>}, {pipeline_mode = #tpu.pipeline_mode<synchronous>, transform_indices = @transform_2, window_bounds = array<i64: 256, 128>}, {transform_indices = @transform_3, window_bounds = array<i64: 8, 128>}]} {
    %c0 = arith.constant 0 : index
    %c0_0 = arith.constant 0 : index
    %0 = vector.load %arg1[%c0, %c0_0] : memref<8x128xbf16, #tpu.memory_space<vmem>>, vector<8x128xbf16>
    %c0_1 = arith.constant 0 : index
    %c0_2 = arith.constant 0 : index
    %1 = vector.load %arg2[%c0_1, %c0_2] : memref<128x256xbf16, #tpu.memory_space<vmem>>, vector<128x256xbf16>
    %cst = arith.constant dense<0.000000e+00> : vector<8x256xf32>
    %2 = tpu.matmul %0, %1, %cst {dimension_numbers = #tpu.dot_dimension_numbers<[1], [0], [0], [1], [0, 0, 1, 1], [], []>} : vector<8x128xbf16>, vector<128x256xbf16>, vector<8x256xf32> -> vector<8x256xf32>
    %cst_3 = arith.constant 0.00999999977 : f32
    %3 = vector.broadcast %cst_3 : f32 to vector<8x256xf32>
    %4 = arith.mulf %3, %2 : vector<8x256xf32>
    %5 = arith.maximumf %2, %4 : vector<8x256xf32>
    %6 = arith.truncf %5 : vector<8x256xf32> to vector<8x256xbf16>
    %c0_4 = arith.constant 0 : index
    %c0_5 = arith.constant 0 : index
    %7 = vector.load %arg3[%c0_4, %c0_5] : memref<256x128xbf16, #tpu.memory_space<vmem>>, vector<256x128xbf16>
    %cst_6 = arith.constant dense<0.000000e+00> : vector<8x128xf32>
    %8 = tpu.matmul %6, %7, %cst_6 {dimension_numbers = #tpu.dot_dimension_numbers<[1], [0], [0], [1], [0, 0, 1, 1], [], []>} : vector<8x256xbf16>, vector<256x128xbf16>, vector<8x128xf32> -> vector<8x128xf32>
    %cst_7 = arith.constant 0.00999999977 : f32
    %9 = vector.broadcast %cst_7 : f32 to vector<8x128xf32>
    %10 = arith.mulf %9, %8 : vector<8x128xf32>
    %11 = arith.maximumf %8, %10 : vector<8x128xf32>
    %c0_8 = arith.constant 0 : index
    %c0_9 = arith.constant 0 : index
    %12 = vector.load %arg4[%c0_8, %c0_9] : memref<8x128xf32, #tpu.memory_space<vmem>>, vector<8x128xf32>
    tpu.vector_store %arg4[%c0_8, %c0_9], %11 {strides = array<i32>} : memref<8x128xf32, #tpu.memory_space<vmem>>, vector<8x128xf32>,
    return
  }
  func.func @transform_0(%arg0: i32) -> (i32, i32) {
    %c0_i32 = arith.constant 0 : i32
    %c0_i32_0 = arith.constant 0 : i32
    return %arg0, %c0_i32 : i32, i32
  }
  func.func @transform_1(%arg0: i32) -> (i32, i32) {
    %c0_i32 = arith.constant 0 : i32
    %c0_i32_0 = arith.constant 0 : i32
    %c0_i32_1 = arith.constant 0 : i32
    return %c0_i32, %c0_i32_0 : i32, i32
  }
  func.func @transform_2(%arg0: i32) -> (i32, i32) {
    %c0_i32 = arith.constant 0 : i32
    %c0_i32_0 = arith.constant 0 : i32
    %c0_i32_1 = arith.constant 0 : i32
    return %c0_i32, %c0_i32_0 : i32, i32
  }
  func.func @transform_3(%arg0: i32) -> (i32, i32) {
    %c0_i32 = arith.constant 0 : i32
    %c0_i32_0 = arith.constant 0 : i32
    return %arg0, %c0_i32 : i32, i32
  }
}

</mosaic_0001>

<llo_original>
// kernel: tpu_custom_call.1
$region0: #{tpu_custom_call.1}
  #allocation0 [shape = 'u32[]', space=smem, size = 0x4, offset = 0x4, fixed_abs, tag = 'smem constant byte address 0x4 - core index']
  #allocation1 [shape = 'u32[72,128]{1,0:T(1,128)}', space=vmem, size = 0x9000, scoped, tag = 'internal scratch']
  %s0 = inlined_call_operand.hbm [shape: bf16[8,128], index: 0, kind: input, shape index: {}]
  %s1 = inlined_call_operand.hbm [shape: bf16[128,256], index: 1, kind: input, shape index: {}]
  %s2 = inlined_call_operand.hbm [shape: bf16[256,128], index: 2, kind: input, shape index: {}]
  %s3 = inlined_call_operand.hbm [shape: f32[8,128], index: 3, kind: output, shape index: {}]
  %s4 = sld [smem:[#allocation0]]
  $region34: #{tpu_custom_call.1} parent=0
    _
  %s6 = ssub.s32 1, %s4
  %s7 = scalar_select 0, %s6, %s4
  $region1: #{tpu_custom_call.1} parent=0
    #allocation2 [shape = 'u8[2048]{0}', space=vmem, size = 0x800, scoped, tag = 'input window, operand 0, single buffered']
    #allocation3 [shape = 's32[1]{0}', space=sflag, size = 0x4, scoped, tag = 'scoped memory for tpu_custom_call.1']
    #allocation4 [shape = 's32[1]{0}', space=sflag, size = 0x4, scoped, tag = 'scoped memory for tpu_custom_call.1']
    #allocation5 [shape = 'u8[65536]{0}', space=vmem, size = 0x10000, scoped, tag = 'input window, operand 1, single buffered']
    #allocation6 [shape = 's32[1]{0}', space=sflag, size = 0x4, scoped, tag = 'scoped memory for tpu_custom_call.1']
    #allocation7 [shape = 'u8[65536]{0}', space=vmem, size = 0x10000, scoped, tag = 'input window, operand 2, single buffered']
    #allocation8 [shape = 'u8[4096]{0}', space=vmem, size = 0x1000, scoped, tag = 'output window, operand 0, single buffered']
    %8 = vsyncpa [#allocation3], 0
    %9 = vsyncpa [#allocation6], 0
    %10 = vsyncpa [#allocation4], 0
    // Predicated region
    $region2: #{tpu_custom_call.1} parent=1 // pred_check
      _
    $region3: #{tpu_custom_call.1} parent=1 // pred_check_branch
      %12 = sbr.rel (0) target = $region5
    $region4: #{tpu_custom_call.1} parent=1 // pred_region
      %14 = vsyncadd [#allocation3], 0
      %s16 = sshll.u32 %s0, 4
      %s17 = int_to_ptr.hbm [resolvable:$true] %s16
      %s18 = sshll.u32 [#allocation2], 4
      %s19 = int_to_ptr.vmem [resolvable:$true] %s18
      %21 = dma.hbm_to_vmem [thread:$0]  %s17, 64, %s19, [#allocation3]
    $region5: #{tpu_custom_call.1} parent=1 // pred_fallthru
      _
    // Predicated region
    $region6: #{tpu_custom_call.1} parent=1 // pred_check
      _
    $region7: #{tpu_custom_call.1} parent=1 // pred_check_branch
      %23 = sbr.rel (0) target = $region9
    $region8: #{tpu_custom_call.1} parent=1 // pred_region
      %25 = vsyncadd [#allocation6], 0
      %s26 = sshll.u32 %s1, 4
      %s27 = int_to_ptr.hbm [resolvable:$true] %s26
      %s28 = sshll.u32 [#allocation5], 4
      %s29 = int_to_ptr.vmem [resolvable:$true] %s28
      %34 = dma.hbm_to_vmem [thread:$0]  %s27, 2048, %s29, [#allocation6], 128, 128, 8
    $region9: #{tpu_custom_call.1} parent=1 // pred_fallthru
      _
    // Predicated region
    $region10: #{tpu_custom_call.1} parent=1 // pred_check
      _
    $region11: #{tpu_custom_call.1} parent=1 // pred_check_branch
      %36 = sbr.rel (0) target = $region13
    $region12: #{tpu_custom_call.1} parent=1 // pred_region
      %38 = vsyncadd [#allocation6], 0
      %s39 = sshll.u32 %s2, 4
      %s40 = int_to_ptr.hbm [resolvable:$true] %s39
      %s41 = sshll.u32 [#allocation7], 4
      %s42 = int_to_ptr.vmem [resolvable:$true] %s41
      %47 = dma.hbm_to_vmem [thread:$0]  %s40, 2048, %s42, [#allocation6], 64, 64, 4
    $region13: #{tpu_custom_call.1} parent=1 // pred_fallthru
      _
    // Predicated region
    $region14: #{tpu_custom_call.1} parent=1 // pred_check
      _
    $region15: #{tpu_custom_call.1} parent=1 // pred_check_branch
      %49 = sbr.rel (0) target = $region17
    $region16: #{tpu_custom_call.1} parent=1 // pred_region
      %51 = dma.done [#allocation3], 64
    $region17: #{tpu_custom_call.1} parent=1 // pred_fallthru
      _
    // Predicated region
    $region18: #{tpu_custom_call.1} parent=1 // pred_check
      _
    $region19: #{tpu_custom_call.1} parent=1 // pred_check_branch
      %53 = sbr.rel (0) target = $region21
    $region20: #{tpu_custom_call.1} parent=1 // pred_region
      %55 = dma.done [#allocation6], 2048
    $region21: #{tpu_custom_call.1} parent=1 // pred_fallthru
      _
    // Predicated region
    $region22: #{tpu_custom_call.1} parent=1 // pred_check
      _
    $region23: #{tpu_custom_call.1} parent=1 // pred_check_branch
      %57 = sbr.rel (0) target = $region25
    $region24: #{tpu_custom_call.1} parent=1 // pred_region
      %59 = dma.done [#allocation6], 2048
    $region25: #{tpu_custom_call.1} parent=1 // pred_fallthru
      _
    %v60 = vld [vmem:[#allocation2] sm:$0xf]
    %v61 = vld [vmem:[#allocation5] sm:$0xff]
    %v62 = vld [vmem:[#allocation5 + $0x8] sm:$0xff]
    %v63 = vld [vmem:[#allocation5 + $0x10] sm:$0xff]
    %v64 = vld [vmem:[#allocation5 + $0x18] sm:$0xff]
    %v65 = vld [vmem:[#allocation5 + $0x20] sm:$0xff]
    %v66 = vld [vmem:[#allocation5 + $0x28] sm:$0xff]
    %v67 = vld [vmem:[#allocation5 + $0x30] sm:$0xff]
    %v68 = vld [vmem:[#allocation5 + $0x38] sm:$0xff]
    %v69 = vld [vmem:[#allocation5 + $0x40] sm:$0xff]
    %v70 = vld [vmem:[#allocation5 + $0x48] sm:$0xff]
    %v71 = vld [vmem:[#allocation5 + $0x50] sm:$0xff]
    %v72 = vld [vmem:[#allocation5 + $0x58] sm:$0xff]
    %v73 = vld [vmem:[#allocation5 + $0x60] sm:$0xff]
    %v74 = vld [vmem:[#allocation5 + $0x68] sm:$0xff]
    %v75 = vld [vmem:[#allocation5 + $0x70] sm:$0xff]
    %v76 = vld [vmem:[#allocation5 + $0x78] sm:$0xff]
    %v93 = vunpack.c.l.b16 %v61
    %v94 = vunpack.c.h.b16 %v61
    %v95 = vunpack.c.l.b16 %v62
    %v96 = vunpack.c.h.b16 %v62
    %v97 = vunpack.c.l.b16 %v63
    %v98 = vunpack.c.h.b16 %v63
    %v99 = vunpack.c.l.b16 %v64
    %v100 = vunpack.c.h.b16 %v64
    %v101 = vunpack.c.l.b16 %v65
    %v102 = vunpack.c.h.b16 %v65
    %v103 = vunpack.c.l.b16 %v66
    %v104 = vunpack.c.h.b16 %v66
    %v105 = vunpack.c.l.b16 %v67
    %v106 = vunpack.c.h.b16 %v67
    %v107 = vunpack.c.l.b16 %v68
    %v108 = vunpack.c.h.b16 %v68
    %v109 = vunpack.c.l.b16 %v69
    %v110 = vunpack.c.h.b16 %v69
    %v111 = vunpack.c.l.b16 %v70
    %v112 = vunpack.c.h.b16 %v70
    %v113 = vunpack.c.l.b16 %v71
    %v114 = vunpack.c.h.b16 %v71
    %v115 = vunpack.c.l.b16 %v72
    %v116 = vunpack.c.h.b16 %v72
    %v117 = vunpack.c.l.b16 %v73
    %v118 = vunpack.c.h.b16 %v73
    %v119 = vunpack.c.l.b16 %v74
    %v120 = vunpack.c.h.b16 %v74
    %v121 = vunpack.c.l.b16 %v75
    %v122 = vunpack.c.h.b16 %v75
    %v123 = vunpack.c.l.b16 %v76
    %v124 = vunpack.c.h.b16 %v76
    %v125 = vpack.c.b16 %v95, %v93
    %v126 = vpack.c.b16 %v96, %v94
    %v127 = vpack.c.b16 %v99, %v97
    %v128 = vpack.c.b16 %v100, %v98
    %v129 = vpack.c.b16 %v103, %v101
    %v130 = vpack.c.b16 %v104, %v102
    %v131 = vpack.c.b16 %v107, %v105
    %v132 = vpack.c.b16 %v108, %v106
    %v133 = vpack.c.b16 %v111, %v109
    %v134 = vpack.c.b16 %v112, %v110
    %v135 = vpack.c.b16 %v115, %v113
    %v136 = vpack.c.b16 %v116, %v114
    %v137 = vpack.c.b16 %v119, %v117
    %v138 = vpack.c.b16 %v120, %v118
    %v139 = vpack.c.b16 %v123, %v121
    %v140 = vpack.c.b16 %v124, %v122
    %157 = vmatpush.bf16.msra.mxu0 %v139
    %158 = vmatpush.bf16.msra.mxu0 %v137
    %159 = vmatpush.bf16.msra.mxu0 %v135
    %160 = vmatpush.bf16.msra.mxu0 %v133
    %161 = vmatpush.bf16.msra.mxu0 %v131
    %162 = vmatpush.bf16.msra.mxu0 %v129
    %163 = vmatpush.bf16.msra.mxu0 %v127
    %164 = vmatpush.bf16.msra.mxu0 %v125
    %165 = vmatmul.bf16.gmra.mxu0 %v60
    %v166 = vpop.f32.mrf.mxu0
    %v167 = vadd.f32 0.0, %v166
    %v168 = vpop.f32.mrf.mxu0
    %169 = vdwg.mxu0
    %170 = vmatpush.bf16.msra.mxu0 %v140
    %171 = vmatpush.bf16.msra.mxu0 %v138
    %172 = vmatpush.bf16.msra.mxu0 %v136
    %173 = vmatpush.bf16.msra.mxu0 %v134
    %174 = vmatpush.bf16.msra.mxu0 %v132
    %175 = vmatpush.bf16.msra.mxu0 %v130
    %176 = vmatpush.bf16.msra.mxu0 %v128
    %177 = vmatpush.bf16.msra.mxu0 %v126
    %178 = vmatmul.bf16.gmra.mxu0 %v60
    %v179 = vpop.f32.mrf.mxu0
    %v180 = vadd.f32 0.0, %v179
    %v181 = vpop.f32.mrf.mxu0
    %182 = vdwg.mxu0
    %v183 = vmul.f32 %v167, 0.01
    %v184 = vmul.f32 %v180, 0.01
    %v185 = vmax.f32 %v167, %v183
    %v186 = vmax.f32 %v180, %v184
    %v187 = vpack.c.bf16 %v185, %v185
    %v188 = vpack.c.bf16 %v186, %v186
    %v189 = vld [vmem:[#allocation7] sm:$0xf]
    %v190 = vld [vmem:[#allocation7 + $0x4] sm:$0xf]
    %v191 = vld [vmem:[#allocation7 + $0x8] sm:$0xf]
    %v192 = vld [vmem:[#allocation7 + $0xc] sm:$0xf]
    %v193 = vld [vmem:[#allocation7 + $0x10] sm:$0xf]
    %v194 = vld [vmem:[#allocation7 + $0x14] sm:$0xf]
    %v195 = vld [vmem:[#allocation7 + $0x18] sm:$0xf]
    %v196 = vld [vmem:[#allocation7 + $0x1c] sm:$0xf]
    %v197 = vld [vmem:[#allocation7 + $0x20] sm:$0xf]
    %v198 = vld [vmem:[#allocation7 + $0x24] sm:$0xf]
    %v199 = vld [vmem:[#allocation7 + $0x28] sm:$0xf]
    %v200 = vld [vmem:[#allocation7 + $0x2c] sm:$0xf]
    %v201 = vld [vmem:[#allocation7 + $0x30] sm:$0xf]
    %v202 = vld [vmem:[#allocation7 + $0x34] sm:$0xf]
    %v203 = vld [vmem:[#allocation7 + $0x38] sm:$0xf]
    %v204 = vld [vmem:[#allocation7 + $0x3c] sm:$0xf]
    %v205 = vld [vmem:[#allocation7 + $0x40] sm:$0xf]
    %v206 = vld [vmem:[#allocation7 + $0x44] sm:$0xf]
    %v207 = vld [vmem:[#allocation7 + $0x48] sm:$0xf]
    %v208 = vld [vmem:[#allocation7 + $0x4c] sm:$0xf]
    %v209 = vld [vmem:[#allocation7 + $0x50] sm:$0xf]
    %v210 = vld [vmem:[#allocation7 + $0x54] sm:$0xf]
    %v211 = vld [vmem:[#allocation7 + $0x58] sm:$0xf]
    %v212 = vld [vmem:[#allocation7 + $0x5c] sm:$0xf]
    %v213 = vld [vmem:[#allocation7 + $0x60] sm:$0xf]
    %v214 = vld [vmem:[#allocation7 + $0x64] sm:$0xf]
    %v215 = vld [vmem:[#allocation7 + $0x68] sm:$0xf]
    %v216 = vld [vmem:[#allocation7 + $0x6c] sm:$0xf]
    %v217 = vld [vmem:[#allocation7 + $0x70] sm:$0xf]
    %v218 = vld [vmem:[#allocation7 + $0x74] sm:$0xf]
    %v219 = vld [vmem:[#allocation7 + $0x78] sm:$0xf]
    %v220 = vld [vmem:[#allocation7 + $0x7c] sm:$0xf]
    %v253 = vunpack.c.l.b16 %v189
    %v254 = vunpack.c.l.b16 %v190
    %v255 = vunpack.c.l.b16 %v191
    %v256 = vunpack.c.l.b16 %v192
    %v257 = vunpack.c.l.b16 %v193
    %v258 = vunpack.c.l.b16 %v194
    %v259 = vunpack.c.l.b16 %v195
    %v260 = vunpack.c.l.b16 %v196
    %v261 = vunpack.c.l.b16 %v197
    %v262 = vunpack.c.l.b16 %v198
    %v263 = vunpack.c.l.b16 %v199
    %v264 = vunpack.c.l.b16 %v200
    %v265 = vunpack.c.l.b16 %v201
    %v266 = vunpack.c.l.b16 %v202
    %v267 = vunpack.c.l.b16 %v203
    %v268 = vunpack.c.l.b16 %v204
    %v269 = vunpack.c.l.b16 %v205
    %v270 = vunpack.c.l.b16 %v206
    %v271 = vunpack.c.l.b16 %v207
    %v272 = vunpack.c.l.b16 %v208
    %v273 = vunpack.c.l.b16 %v209
    %v274 = vunpack.c.l.b16 %v210
    %v275 = vunpack.c.l.b16 %v211
    %v276 = vunpack.c.l.b16 %v212
    %v277 = vunpack.c.l.b16 %v213
    %v278 = vunpack.c.l.b16 %v214
    %v279 = vunpack.c.l.b16 %v215
    %v280 = vunpack.c.l.b16 %v216
    %v281 = vunpack.c.l.b16 %v217
    %v282 = vunpack.c.l.b16 %v218
    %v283 = vunpack.c.l.b16 %v219
    %v284 = vunpack.c.l.b16 %v220
    %v285 = vpack.c.b16 %v254, %v253
    %v286 = vpack.c.b16 %v256, %v255
    %v287 = vpack.c.b16 %v258, %v257
    %v288 = vpack.c.b16 %v260, %v259
    %v289 = vpack.c.b16 %v262, %v261
    %v290 = vpack.c.b16 %v264, %v263
    %v291 = vpack.c.b16 %v266, %v265
    %v292 = vpack.c.b16 %v268, %v267
    %v293 = vpack.c.b16 %v270, %v269
    %v294 = vpack.c.b16 %v272, %v271
    %v295 = vpack.c.b16 %v274, %v273
    %v296 = vpack.c.b16 %v276, %v275
    %v297 = vpack.c.b16 %v278, %v277
    %v298 = vpack.c.b16 %v280, %v279
    %v299 = vpack.c.b16 %v282, %v281
    %v300 = vpack.c.b16 %v284, %v283
    %317 = vmatpush.bf16.msra.mxu0 %v292
    %318 = vmatpush.bf16.msra.mxu0 %v291
    %319 = vmatpush.bf16.msra.mxu0 %v290
    %320 = vmatpush.bf16.msra.mxu0 %v289
    %321 = vmatpush.bf16.msra.mxu0 %v288
    %322 = vmatpush.bf16.msra.mxu0 %v287
    %323 = vmatpush.bf16.msra.mxu0 %v286
    %324 = vmatpush.bf16.msra.mxu0 %v285
    %325 = vmatmul.bf16.gmra.mxu0 %v187
    %v326 = vpop.f32.mrf.mxu0
    %v327 = vadd.f32 0.0, %v326
    %v328 = vpop.f32.mrf.mxu0
    %329 = vdwg.mxu0
    %330 = vmatpush.bf16.msra.mxu0 %v300
    %331 = vmatpush.bf16.msra.mxu0 %v299
    %332 = vmatpush.bf16.msra.mxu0 %v298
    %333 = vmatpush.bf16.msra.mxu0 %v297
    %334 = vmatpush.bf16.msra.mxu0 %v296
    %335 = vmatpush.bf16.msra.mxu0 %v295
    %336 = vmatpush.bf16.msra.mxu0 %v294
    %337 = vmatpush.bf16.msra.mxu0 %v293
    %338 = vmatmul.bf16.gmra.mxu0 %v188
    %v339 = vpop.f32.mrf.mxu0
    %v340 = vadd.f32 %v327, %v339
    %v341 = vpop.f32.mrf.mxu0
    %342 = vdwg.mxu0
    %v343 = vmul.f32 %v340, 0.01
    %v344 = vmax.f32 %v340, %v343
    %345 = vst [vmem:[#allocation8] sm:$0xff] %v344
    // Predicated region
    $region26: #{tpu_custom_call.1} parent=1 // pred_check
      _
    $region27: #{tpu_custom_call.1} parent=1 // pred_check_branch
      %347 = sbr.rel (0) target = $region29
    $region28: #{tpu_custom_call.1} parent=1 // pred_region
      %349 = vsyncadd [#allocation4], 0
      %s351 = sshll.u32 [#allocation8], 4
      %s352 = int_to_ptr.vmem [resolvable:$true] %s351
      %s353 = sshll.u32 %s3, 4
      %s354 = int_to_ptr.hbm [resolvable:$true] %s353
      %356 = dma.vmem_to_hbm [thread:$0]  %s352, 128, %s354, [#allocation4]
    $region29: #{tpu_custom_call.1} parent=1 // pred_fallthru
      _
    // Predicated region
    $region30: #{tpu_custom_call.1} parent=1 // pred_check
      _
    $region31: #{tpu_custom_call.1} parent=1 // pred_check_branch
      %358 = sbr.rel (0) target = $region33
    $region32: #{tpu_custom_call.1} parent=1 // pred_region
      %360 = dma.done [#allocation4], 128
    $region33: #{tpu_custom_call.1} parent=1 // pred_fallthru
      _
    %361 = vsyncpa [#allocation3], 1
    %362 = vsyncpa [#allocation6], 1
    %363 = vsyncpa [#allocation4], 1

</llo_original>
